<compile_context>
chip_gen: v7x
topology: tpu7x:2x2x1
jax: 0.10.0
libtpu: 0.0.40
codegen_flags: <defaults>
</compile_context>

<pallas_src>
import functools
import math

import jax
import jax.numpy as jnp
from jax import lax
from jax.experimental import pallas as pl
from jax.experimental.pallas import tpu as pltpu

# ----------------------------- model config ---------------------------------
N_FEATURES = 4
N_HIDDEN = 32
SEQ_LEN = 8
N_LAYERS = 2          # kernel hardcodes the 2-layer stack (module default)
BATCH = 2             # len(sequences) == T of the LSTM


# ----------------------------- weight slab layout ----------------------------
def _round_up(x, m):
    return (x + m - 1) // m * m


def _slab_layout(n_features, n_hidden):
    """Row offsets of each operand inside the packed (rows, 4H) f32 weight slab.

    Every operand starts on an 8-row (sublane-tile) boundary so every in-kernel
    static slice is sublane-aligned (no shifted/strided loads).
    """
    H = n_hidden
    off = {}
    r = 0

    def take(name, rows):
        nonlocal r
        off[name] = r
        r += _round_up(rows, 8)

    take("wih0", n_features)   # (F, 4H)  layer-0 input weights, transposed
    take("whh0", H)            # (H, 4H)  layer-0 recurrent weights, transposed
    take("b0", 1)              # (1, 4H)  fused layer-0 bias (b_ih + b_hh)
    take("wih1", H)            # (H, 4H)  layer-1 input weights, transposed
    take("whh1", H)            # (H, 4H)  layer-1 recurrent weights, transposed
    take("b1", 1)              # (1, 4H)  fused layer-1 bias
    take("wl", 1)              # (1, H)   linear head weight (lanes 0..H-1)
    take("bl", 1)              # (1, 4H)  linear head bias, replicated over lanes
    return off, r


def prepare_params(params, *, n_features=N_FEATURES, n_hidden=N_HIDDEN):
    """One-time param prep: transpose, fuse biases, pack into a single VMEM slab."""
    H = n_hidden
    lanes = 4 * H
    off, rows = _slab_layout(n_features, n_hidden)
    slab = jnp.zeros((rows, lanes), jnp.float32)
    slab = slab.at[off["wih0"]:off["wih0"] + n_features, :].set(
        params["w_ih0"].T.astype(jnp.float32))
    slab = slab.at[off["whh0"]:off["whh0"] + H, :].set(
        params["w_hh0"].T.astype(jnp.float32))
    slab = slab.at[off["b0"], :].set(
        (params["b_ih0"] + params["b_hh0"]).astype(jnp.float32))
    slab = slab.at[off["wih1"]:off["wih1"] + H, :].set(
        params["w_ih1"].T.astype(jnp.float32))
    slab = slab.at[off["whh1"]:off["whh1"] + H, :].set(
        params["w_hh1"].T.astype(jnp.float32))
    slab = slab.at[off["b1"], :].set(
        (params["b_ih1"] + params["b_hh1"]).astype(jnp.float32))
    slab = slab.at[off["wl"], :H].set(params["w_lin"][0].astype(jnp.float32))
    slab = slab.at[off["bl"], :].set(
        jnp.broadcast_to(params["b_lin"].astype(jnp.float32), (lanes,)))
    return slab


# ----------------------------- Pallas kernel --------------------------------
def _fused_forward_kernel(x_ref, w_ref, out_ref, *, n_features, hidden, seq_len,
                          n_seq):
    """Entire forward pass in one grid-less kernel invocation.

    x_ref : (T*B, F)  time-major flattened input, T = n_seq, B = seq_len
    w_ref : (rows, 4H) packed f32 weight slab (see _slab_layout)
    out   : (1, B)    linear head over ALL final-step rows (batch on lane axis)
    """
    H = hidden
    F = n_features
    B = seq_len
    T = n_seq
    off, _ = _slab_layout(F, H)

    # --- static, sublane-aligned views into the packed weight slab ----------
    wih0 = w_ref[off["wih0"]:off["wih0"] + F, :]          # (F, 4H)
    whh0 = w_ref[off["whh0"]:off["whh0"] + H, :]          # (H, 4H)
    b0   = w_ref[off["b0"]:off["b0"] + 1, :]              # (1, 4H)
    wih1 = w_ref[off["wih1"]:off["wih1"] + H, :]          # (H, 4H)
    whh1 = w_ref[off["whh1"]:off["whh1"] + H, :]          # (H, 4H)
    b1   = w_ref[off["b1"]:off["b1"] + 1, :]              # (1, 4H)
    wl   = w_ref[off["wl"]:off["wl"] + 1, 0:H]            # (1, H)
    bl   = w_ref[off["bl"]:off["bl"] + 1, 0:B]            # (1, B)  replicated b_lin

    # Single-sigmoid activation over the whole (B, 4H) vreg:
    #   i/f/o lanes: sigmoid(x);   g lanes: tanh(x) = 2*sigmoid(2x) - 1.
    lane = lax.broadcasted_iota(jnp.int32, (B, 4 * H), dimension=1)
    g_lane = (lane >= 2 * H) & (lane < 3 * H)
    pre_scale = jnp.where(g_lane, jnp.float32(2.0), jnp.float32(1.0))   # (B,4H)
    post_shift = jnp.where(g_lane, jnp.float32(1.0), jnp.float32(0.0))  # (B,4H)

    def activate(gates):
        s = jax.nn.sigmoid(gates * pre_scale)      # ONE EUP pass over (B, 4H)
        act = s * pre_scale - post_shift           # VPU fixup (free slots)
        return (act[:, 0 * H:1 * H], act[:, 1 * H:2 * H],
                act[:, 2 * H:3 * H], act[:, 3 * H:4 * H])

    # Layer-0 input path for ALL time steps in a single MXU pass (bias folded).
    xg_all = jnp.dot(x_ref[...], wih0,
                     preferred_element_type=jnp.float32) + b0          # (T*B,4H)

    # ---- t = 0 : zero initial state -> both recurrent matmuls dropped ------
    i0, f0, g0, o0 = activate(xg_all[0:B, :])
    c0 = i0 * g0                                   # f0 * 0 elided
    h0 = o0 * jnp.tanh(c0)

    i1, f1, g1, o1 = activate(
        jnp.dot(h0, wih1, preferred_element_type=jnp.float32) + b1)
    c1 = i1 * g1                                   # f1 * 0 elided
    h1 = o1 * jnp.tanh(c1)

    # ---- t = 1 .. T-1 : full recurrence; layer-1 matmul split (no concat) ---
    for t in range(1, T):                          # tiny T, fully unrolled
        gates0 = (xg_all[t * B:(t + 1) * B, :]
                  + jnp.dot(h0, whh0, preferred_element_type=jnp.float32))
        i0, f0, g0, o0 = activate(gates0)
        c0 = f0 * c0 + i0 * g0
        h0 = o0 * jnp.tanh(c0)

        # h1·W_hh1 depends only on the previous step's h1, so it can issue
        # concurrently with the layer-0 work above (no concat on the chain).
        gates1 = (jnp.dot(h0, wih1, preferred_element_type=jnp.float32)
                  + jnp.dot(h1, whh1, preferred_element_type=jnp.float32)
                  + b1)
        i1, f1, g1, o1 = activate(gates1)
        c1 = f1 * c1 + i1 * g1
        h1 = o1 * jnp.tanh(c1)

    # ---- linear head, batch on the LANE axis: (1, B) = wl (1,H) · h1ᵀ (H,B) --
    head = lax.dot_general(wl, h1, (((1,), (1,)), ((), ())),
                           preferred_element_type=jnp.float32)          # (1, B)
    out_ref[...] = head + bl


# ----------------------------- wrapper ---------------------------------------
def corona_virus_predictor_forward(sequences, weight_slab, *,
                                   n_features=N_FEATURES, n_hidden=N_HIDDEN,
                                   seq_len=SEQ_LEN):
    """Reproduces CoronaVirusPredictor.forward (after reset_hidden_state)."""
    n = sequences.shape[0]
    # torch: lstm_out.view(seq_len, n, H)[-1] (raw reshape) is only the final
    # time step's rows seq_len-n .. seq_len-1 when n <= seq_len.
    assert n <= seq_len, "'last_time_step' raw-reshape trick assumes n <= seq_len"

    # torch: sequences.view(len(sequences), seq_len, -1) -> flatten to (T*B, F).
    x2d = sequences.reshape(n * seq_len, n_features).astype(jnp.float32)

    kernel = functools.partial(_fused_forward_kernel, n_features=n_features,
                               hidden=n_hidden, seq_len=seq_len, n_seq=n)
    vmem = pl.BlockSpec(memory_space=pltpu.MemorySpace.VMEM)
    head_row = pl.pallas_call(
        kernel,
        out_shape=jax.ShapeDtypeStruct((1, seq_len), jnp.float32),
        in_specs=[vmem, vmem],
        out_specs=vmem,
    )(x2d, weight_slab)

    # Select the torch-semantics rows and restore the (n, 1) output layout.
    return head_row[:, seq_len - n:].T                                  # (n, 1)


def init_params(key, n_features, n_hidden, n_layers=2):
    """PyTorch-style U(-1/sqrt(H), 1/sqrt(H)) init for LSTM and Linear."""
    bound = 1.0 / math.sqrt(n_hidden)
    keys = jax.random.split(key, 4 * n_layers + 2)
    params = {}
    k = 0
    for layer in range(n_layers):
        in_dim = n_features if layer == 0 else n_hidden
        params[f"w_ih{layer}"] = jax.random.uniform(
            keys[k], (4 * n_hidden, in_dim), jnp.float32, -bound, bound); k += 1
        params[f"w_hh{layer}"] = jax.random.uniform(
            keys[k], (4 * n_hidden, n_hidden), jnp.float32, -bound, bound); k += 1
        params[f"b_ih{layer}"] = jax.random.uniform(
            keys[k], (4 * n_hidden,), jnp.float32, -bound, bound); k += 1
        params[f"b_hh{layer}"] = jax.random.uniform(
            keys[k], (4 * n_hidden,), jnp.float32, -bound, bound); k += 1
    params["w_lin"] = jax.random.uniform(
        keys[k], (1, n_hidden), jnp.float32, -bound, bound); k += 1
    params["b_lin"] = jax.random.uniform(
        keys[k], (1,), jnp.float32, -bound, bound)
    return params


# ----------------------------- pure-JAX reference ----------------------------
def _reference_forward(sequences, params, n_hidden=N_HIDDEN, seq_len=SEQ_LEN):
    n = sequences.shape[0]
    x = sequences.reshape(n, seq_len, -1).astype(jnp.float32)
    hp = lax.Precision.HIGHEST   # full-f32 matmuls (TPU default would be bf16)

    def cell(x_t, h, c, wih, whh, bih, bhh):
        g = (jnp.dot(x_t, wih.T, precision=hp)
             + jnp.dot(h, whh.T, precision=hp) + bih + bhh)
        i = jax.nn.sigmoid(g[:, :n_hidden])
        f = jax.nn.sigmoid(g[:, n_hidden:2 * n_hidden])
        gg = jnp.tanh(g[:, 2 * n_hidden:3 * n_hidden])
        o = jax.nn.sigmoid(g[:, 3 * n_hidden:])
        c = f * c + i * gg
        return o * jnp.tanh(c), c

    h0 = c0 = h1 = c1 = jnp.zeros((seq_len, n_hidden), jnp.float32)
    outs = []
    for t in range(n):
        h0, c0 = cell(x[t], h0, c0, params["w_ih0"], params["w_hh0"],
                      params["b_ih0"], params["b_hh0"])
        h1, c1 = cell(h0, h1, c1, params["w_ih1"], params["w_hh1"],
                      params["b_ih1"], params["b_hh1"])
        outs.append(h1)
    lstm_out = jnp.stack(outs, axis=0)
    last = lstm_out.reshape(seq_len, n, n_hidden)[-1]
    return jnp.dot(last, params["w_lin"].T, precision=hp) + params["b_lin"]


# ----------------------------- main -------------------------------------------
if __name__ == "__main__":
    key = jax.random.PRNGKey(0)
    k_param, k_data = jax.random.split(key)

    params = init_params(k_param, N_FEATURES, N_HIDDEN, N_LAYERS)
    weight_slab = prepare_params(params)          # one-time packing (not per call)
    sequences = jax.random.normal(k_data, (BATCH, SEQ_LEN, N_FEATURES),
                                  dtype=jnp.float32)

    forward = jax.jit(functools.partial(
        corona_virus_predictor_forward,
        n_features=N_FEATURES, n_hidden=N_HIDDEN, seq_len=SEQ_LEN))

    y = forward(sequences, weight_slab)
    y = jax.block_until_ready(y)

    y_ref = _reference_forward(sequences, params)
    assert y.shape == (BATCH, 1), y.shape
    # Tightened ~200x vs the previous 2e-2 (per review); headroom covers the
    # tanh = 2*sigmoid(2x)-1 rewrite and EUP-vs-XLA transcendental rounding.
    assert jnp.allclose(y, y_ref, atol=1e-4, rtol=1e-4), (y, y_ref)

    print("KERNEL_OK")
</pallas_src>

<mosaic_0001>
module attributes {stable_mosaic.version = 11 : i64} {
  func.func @_fused_forward_kernel(%arg0: memref<16x4xf32, #tpu.memory_space<vmem>>, %arg1: memref<136x128xf32, #tpu.memory_space<vmem>>, %arg2: memref<1x8xf32, #tpu.memory_space<vmem>>) attributes {dimension_semantics = [], scalar_prefetch = 0 : i64, scratch_operands = 0 : i64, tpu.core_type = #tpu.core_type<tc>} {
    %c0 = arith.constant 0 : index
    %c0_0 = arith.constant 0 : index
    %0 = vector.load %arg1[%c0, %c0_0] : memref<136x128xf32, #tpu.memory_space<vmem>>, vector<4x128xf32>
    %c8 = arith.constant 8 : index
    %c0_1 = arith.constant 0 : index
    %1 = vector.load %arg1[%c8, %c0_1] : memref<136x128xf32, #tpu.memory_space<vmem>>, vector<32x128xf32>
    %c40 = arith.constant 40 : index
    %c0_2 = arith.constant 0 : index
    %2 = vector.load %arg1[%c40, %c0_2] : memref<136x128xf32, #tpu.memory_space<vmem>>, vector<1x128xf32>
    %c48 = arith.constant 48 : index
    %c0_3 = arith.constant 0 : index
    %3 = vector.load %arg1[%c48, %c0_3] : memref<136x128xf32, #tpu.memory_space<vmem>>, vector<32x128xf32>
    %c80 = arith.constant 80 : index
    %c0_4 = arith.constant 0 : index
    %4 = vector.load %arg1[%c80, %c0_4] : memref<136x128xf32, #tpu.memory_space<vmem>>, vector<32x128xf32>
    %c112 = arith.constant 112 : index
    %c0_5 = arith.constant 0 : index
    %5 = vector.load %arg1[%c112, %c0_5] : memref<136x128xf32, #tpu.memory_space<vmem>>, vector<1x128xf32>
    %c120 = arith.constant 120 : index
    %c0_6 = arith.constant 0 : index
    %6 = vector.load %arg1[%c120, %c0_6] : memref<136x128xf32, #tpu.memory_space<vmem>>, vector<1x32xf32>
    %c128 = arith.constant 128 : index
    %c0_7 = arith.constant 0 : index
    %7 = vector.load %arg1[%c128, %c0_7] : memref<136x128xf32, #tpu.memory_space<vmem>>, vector<1x8xf32>
    %8 = tpu.iota {dimensions = array<i32: 1>} : vector<8x128xi32>
    %c64_i32 = arith.constant 64 : i32
    %9 = vector.broadcast %c64_i32 : i32 to vector<8x128xi32>
    %10 = arith.cmpi sge, %8, %9 : vector<8x128xi32>
    %c96_i32 = arith.constant 96 : i32
    %11 = vector.broadcast %c96_i32 : i32 to vector<8x128xi32>
    %12 = arith.cmpi slt, %8, %11 : vector<8x128xi32>
    %13 = arith.andi %10, %12 : vector<8x128xi1>
    %cst = arith.constant 2.000000e+00 : f32
    %cst_8 = arith.constant 1.000000e+00 : f32
    %14 = vector.broadcast %cst : f32 to vector<8x128xf32>
    %15 = vector.broadcast %cst_8 : f32 to vector<8x128xf32>
    %16 = arith.select %13, %14, %15 : vector<8x128xi1>, vector<8x128xf32>
    %cst_9 = arith.constant 1.000000e+00 : f32
    %cst_10 = arith.constant 0.000000e+00 : f32
    %17 = vector.broadcast %cst_9 : f32 to vector<8x128xf32>
    %18 = vector.broadcast %cst_10 : f32 to vector<8x128xf32>
    %19 = arith.select %13, %17, %18 : vector<8x128xi1>, vector<8x128xf32>
    %c0_11 = arith.constant 0 : index
    %c0_12 = arith.constant 0 : index
    %20 = vector.load %arg0[%c0_11, %c0_12] : memref<16x4xf32, #tpu.memory_space<vmem>>, vector<16x4xf32>
    %cst_13 = arith.constant dense<0.000000e+00> : vector<16x128xf32>
    %21 = tpu.matmul %20, %0, %cst_13 {dimension_numbers = #tpu.dot_dimension_numbers<[1], [0], [0], [1], [0, 0, 1, 1], [], []>} : vector<16x4xf32>, vector<4x128xf32>, vector<16x128xf32> -> vector<16x128xf32>
    %22 = vector.broadcast %2 : vector<1x128xf32> to vector<16x128xf32>
    %23 = arith.addf %21, %22 : vector<16x128xf32>
    %24 = vector.extract_strided_slice %23 {offsets = [0, 0], sizes = [8, 128], strides = [1, 1]} : vector<16x128xf32> to vector<8x128xf32>
    %25 = arith.mulf %24, %16 : vector<8x128xf32>
    %26 = arith.negf %25 : vector<8x128xf32>
    %27 = math.exp %26 : vector<8x128xf32>
    %cst_14 = arith.constant 1.000000e+00 : f32
    %28 = vector.broadcast %cst_14 : f32 to vector<8x128xf32>
    %29 = arith.addf %28, %27 : vector<8x128xf32>
    %30 = arith.divf %28, %29 : vector<8x128xf32>
    %31 = arith.mulf %30, %16 : vector<8x128xf32>
    %32 = arith.subf %31, %19 : vector<8x128xf32>
    %33 = vector.extract_strided_slice %32 {offsets = [0, 0], sizes = [8, 32], strides = [1, 1]} : vector<8x128xf32> to vector<8x32xf32>
    %34 = vector.extract_strided_slice %32 {offsets = [0, 64], sizes = [8, 32], strides = [1, 1]} : vector<8x128xf32> to vector<8x32xf32>
    %35 = vector.extract_strided_slice %32 {offsets = [0, 96], sizes = [8, 32], strides = [1, 1]} : vector<8x128xf32> to vector<8x32xf32>
    %36 = arith.mulf %33, %34 : vector<8x32xf32>
    %37 = math.tanh %36 : vector<8x32xf32>
    %38 = arith.mulf %35, %37 : vector<8x32xf32>
    %cst_15 = arith.constant dense<0.000000e+00> : vector<8x128xf32>
    %39 = tpu.matmul %38, %3, %cst_15 {dimension_numbers = #tpu.dot_dimension_numbers<[1], [0], [0], [1], [0, 0, 1, 1], [], []>} : vector<8x32xf32>, vector<32x128xf32>, vector<8x128xf32> -> vector<8x128xf32>
    %40 = vector.broadcast %5 : vector<1x128xf32> to vector<8x128xf32>
    %41 = arith.addf %39, %40 : vector<8x128xf32>
    %42 = arith.mulf %41, %16 : vector<8x128xf32>
    %43 = arith.negf %42 : vector<8x128xf32>
    %44 = math.exp %43 : vector<8x128xf32>
    %cst_16 = arith.constant 1.000000e+00 : f32
    %45 = vector.broadcast %cst_16 : f32 to vector<8x128xf32>
    %46 = arith.addf %45, %44 : vector<8x128xf32>
    %47 = arith.divf %45, %46 : vector<8x128xf32>
    %48 = arith.mulf %47, %16 : vector<8x128xf32>
    %49 = arith.subf %48, %19 : vector<8x128xf32>
    %50 = vector.extract_strided_slice %49 {offsets = [0, 0], sizes = [8, 32], strides = [1, 1]} : vector<8x128xf32> to vector<8x32xf32>
    %51 = vector.extract_strided_slice %49 {offsets = [0, 64], sizes = [8, 32], strides = [1, 1]} : vector<8x128xf32> to vector<8x32xf32>
    %52 = vector.extract_strided_slice %49 {offsets = [0, 96], sizes = [8, 32], strides = [1, 1]} : vector<8x128xf32> to vector<8x32xf32>
    %53 = arith.mulf %50, %51 : vector<8x32xf32>
    %54 = math.tanh %53 : vector<8x32xf32>
    %55 = arith.mulf %52, %54 : vector<8x32xf32>
    %56 = vector.extract_strided_slice %23 {offsets = [8, 0], sizes = [8, 128], strides = [1, 1]} : vector<16x128xf32> to vector<8x128xf32>
    %cst_17 = arith.constant dense<0.000000e+00> : vector<8x128xf32>
    %57 = tpu.matmul %38, %1, %cst_17 {dimension_numbers = #tpu.dot_dimension_numbers<[1], [0], [0], [1], [0, 0, 1, 1], [], []>} : vector<8x32xf32>, vector<32x128xf32>, vector<8x128xf32> -> vector<8x128xf32>
    %58 = arith.addf %56, %57 : vector<8x128xf32>
    %59 = arith.mulf %58, %16 : vector<8x128xf32>
    %60 = arith.negf %59 : vector<8x128xf32>
    %61 = math.exp %60 : vector<8x128xf32>
    %cst_18 = arith.constant 1.000000e+00 : f32
    %62 = vector.broadcast %cst_18 : f32 to vector<8x128xf32>
    %63 = arith.addf %62, %61 : vector<8x128xf32>
    %64 = arith.divf %62, %63 : vector<8x128xf32>
    %65 = arith.mulf %64, %16 : vector<8x128xf32>
    %66 = arith.subf %65, %19 : vector<8x128xf32>
    %67 = vector.extract_strided_slice %66 {offsets = [0, 0], sizes = [8, 32], strides = [1, 1]} : vector<8x128xf32> to vector<8x32xf32>
    %68 = vector.extract_strided_slice %66 {offsets = [0, 32], sizes = [8, 32], strides = [1, 1]} : vector<8x128xf32> to vector<8x32xf32>
    %69 = vector.extract_strided_slice %66 {offsets = [0, 64], sizes = [8, 32], strides = [1, 1]} : vector<8x128xf32> to vector<8x32xf32>
    %70 = vector.extract_strided_slice %66 {offsets = [0, 96], sizes = [8, 32], strides = [1, 1]} : vector<8x128xf32> to vector<8x32xf32>
    %71 = arith.mulf %68, %36 : vector<8x32xf32>
    %72 = arith.mulf %67, %69 : vector<8x32xf32>
    %73 = arith.addf %71, %72 : vector<8x32xf32>
    %74 = math.tanh %73 : vector<8x32xf32>
    %75 = arith.mulf %70, %74 : vector<8x32xf32>
    %cst_19 = arith.constant dense<0.000000e+00> : vector<8x128xf32>
    %76 = tpu.matmul %75, %3, %cst_19 {dimension_numbers = #tpu.dot_dimension_numbers<[1], [0], [0], [1], [0, 0, 1, 1], [], []>} : vector<8x32xf32>, vector<32x128xf32>, vector<8x128xf32> -> vector<8x128xf32>
    %cst_20 = arith.constant dense<0.000000e+00> : vector<8x128xf32>
    %77 = tpu.matmul %55, %4, %cst_20 {dimension_numbers = #tpu.dot_dimension_numbers<[1], [0], [0], [1], [0, 0, 1, 1], [], []>} : vector<8x32xf32>, vector<32x128xf32>, vector<8x128xf32> -> vector<8x128xf32>
    %78 = arith.addf %76, %77 : vector<8x128xf32>
    %79 = vector.broadcast %5 : vector<1x128xf32> to vector<8x128xf32>
    %80 = arith.addf %78, %79 : vector<8x128xf32>
    %81 = arith.mulf %80, %16 : vector<8x128xf32>
    %82 = arith.negf %81 : vector<8x128xf32>
    %83 = math.exp %82 : vector<8x128xf32>
    %cst_21 = arith.constant 1.000000e+00 : f32
    %84 = vector.broadcast %cst_21 : f32 to vector<8x128xf32>
    %85 = arith.addf %84, %83 : vector<8x128xf32>
    %86 = arith.divf %84, %85 : vector<8x128xf32>
    %87 = arith.mulf %86, %16 : vector<8x128xf32>
    %88 = arith.subf %87, %19 : vector<8x128xf32>
    %89 = vector.extract_strided_slice %88 {offsets = [0, 0], sizes = [8, 32], strides = [1, 1]} : vector<8x128xf32> to vector<8x32xf32>
    %90 = vector.extract_strided_slice %88 {offsets = [0, 32], sizes = [8, 32], strides = [1, 1]} : vector<8x128xf32> to vector<8x32xf32>
    %91 = vector.extract_strided_slice %88 {offsets = [0, 64], sizes = [8, 32], strides = [1, 1]} : vector<8x128xf32> to vector<8x32xf32>
    %92 = vector.extract_strided_slice %88 {offsets = [0, 96], sizes = [8, 32], strides = [1, 1]} : vector<8x128xf32> to vector<8x32xf32>
    %93 = arith.mulf %90, %53 : vector<8x32xf32>
    %94 = arith.mulf %89, %91 : vector<8x32xf32>
    %95 = arith.addf %93, %94 : vector<8x32xf32>
    %96 = math.tanh %95 : vector<8x32xf32>
    %97 = arith.mulf %92, %96 : vector<8x32xf32>
    %cst_22 = arith.constant dense<0.000000e+00> : vector<1x8xf32>
    %98 = tpu.matmul %6, %97, %cst_22 {dimension_numbers = #tpu.dot_dimension_numbers<[1], [1], [0], [0], [0, 0, 1, 0], [], []>} : vector<1x32xf32>, vector<8x32xf32>, vector<1x8xf32> -> vector<1x8xf32>
    %99 = arith.addf %98, %7 : vector<1x8xf32>
    %c0_23 = arith.constant 0 : index
    %c0_24 = arith.constant 0 : index
    %100 = vector.load %arg2[%c0_23, %c0_24] : memref<1x8xf32, #tpu.memory_space<vmem>>, vector<1x8xf32>
    tpu.vector_store %arg2[%c0_23, %c0_24], %99 {strides = array<i32>} : memref<1x8xf32, #tpu.memory_space<vmem>>, vector<1x8xf32>,
    return
  }
}

</mosaic_0001>

<llo_original>
// kernel: corona_virus_predictor_forward.1
$region0: #{corona_virus_predictor_forward.1}
  #allocation0 [shape = 'u32[]', space=smem, size = 0x4, offset = 0x4, fixed_abs, tag = 'smem constant byte address 0x4 - core index']
  #allocation1 [shape = 'u32[144,128]{1,0:T(1,128)}', space=vmem, size = 0x12000, scoped, tag = 'internal scratch']
  %s0 = inlined_call_operand.vmem [shape: f32[16,4], index: 0, kind: input, shape index: {}]
  %s1 = inlined_call_operand.hbm [shape: f32[136,128], index: 1, kind: input, shape index: {}]
  %s2 = inlined_call_operand.vmem [shape: f32[1,8], index: 2, kind: output, shape index: {}]
  %s3 = sld [smem:[#allocation0]]
  $region22: #{corona_virus_predictor_forward.1} parent=0
    _
  %s5 = ssub.s32 1, %s3
  %s6 = scalar_select 0, %s5, %s3
  $region1: #{corona_virus_predictor_forward.1} parent=0
    #allocation2 [shape = 'u8[69632]{0}', space=vmem, size = 0x11000, scoped, tag = 'input window, operand 1, single buffered']
    #allocation3 [shape = 's32[1]{0}', space=sflag, size = 0x4, scoped, tag = 'scoped memory for corona_virus_predictor_forward.1']
    %7 = vsyncpa [#allocation3], 0
    // Predicated region
    $region2: #{corona_virus_predictor_forward.1} parent=1 // pred_check
      _
    $region3: #{corona_virus_predictor_forward.1} parent=1 // pred_check_branch
      %9 = sbr.rel (0) target = $region5
    $region4: #{corona_virus_predictor_forward.1} parent=1 // pred_region
      _
    $region5: #{corona_virus_predictor_forward.1} parent=1 // pred_fallthru
      _
    // Predicated region
    $region6: #{corona_virus_predictor_forward.1} parent=1 // pred_check
      _
    $region7: #{corona_virus_predictor_forward.1} parent=1 // pred_check_branch
      %11 = sbr.rel (0) target = $region9
    $region8: #{corona_virus_predictor_forward.1} parent=1 // pred_region
      %s13 = ssub.s32 2176, 2176
      %14 = vsyncadd [#allocation3], %s13
      %s15 = sshll.u32 [#allocation2], 4
      %s16 = int_to_ptr.vmem [resolvable:$true] %s15
      %21 = dma.hbm_to_vmem [thread:$0]  %s1, 2176, %s16, [#allocation3], 128, 128, 8
    $region9: #{corona_virus_predictor_forward.1} parent=1 // pred_fallthru
      _
    // Predicated region
    $region10: #{corona_virus_predictor_forward.1} parent=1 // pred_check
      _
    $region11: #{corona_virus_predictor_forward.1} parent=1 // pred_check_branch
      %23 = sbr.rel (0) target = $region13
    $region12: #{corona_virus_predictor_forward.1} parent=1 // pred_region
      %24 = dma.done [#allocation3], 2176
    $region13: #{corona_virus_predictor_forward.1} parent=1 // pred_fallthru
      _
    %v25 = vld [vmem:[#allocation2] sm:$0xf]
    %v26 = vld [vmem:[#allocation2 + $0x8] sm:$0xff]
    %v27 = vld [vmem:[#allocation2 + $0x10] sm:$0xff]
    %v28 = vld [vmem:[#allocation2 + $0x18] sm:$0xff]
    %v29 = vld [vmem:[#allocation2 + $0x20] sm:$0xff]
    %v30 = vld [vmem:[#allocation2 + $0x28] sm:$0x1]
    %v31 = vld [vmem:[#allocation2 + $0x30] sm:$0xff]
    %v32 = vld [vmem:[#allocation2 + $0x38] sm:$0xff]
    %v33 = vld [vmem:[#allocation2 + $0x40] sm:$0xff]
    %v34 = vld [vmem:[#allocation2 + $0x48] sm:$0xff]
    %v35 = vld [vmem:[#allocation2 + $0x50] sm:$0xff]
    %v36 = vld [vmem:[#allocation2 + $0x58] sm:$0xff]
    %v37 = vld [vmem:[#allocation2 + $0x60] sm:$0xff]
    %v38 = vld [vmem:[#allocation2 + $0x68] sm:$0xff]
    %v39 = vld [vmem:[#allocation2 + $0x70] sm:$0x1]
    %v40 = vld [vmem:[#allocation2 + $0x78] sm:$0x1]
    %v41 = vld [vmem:[#allocation2 + $0x80] sm:$0x1]
    %v42 = vlaneseq
    %v43 = vand.u32 %v42, 127
    %vm44 = vcmp.ge.s32.totalorder %v43, 64
    %vm45 = vcmp.lt.s32.totalorder %v43, 96
    %vm46 = vmand %vm44, %vm45
    %v47 = vsel %vm46, 2.0, 1.0
    %v48 = vsel %vm46, 1.0, 0.0
    %v49 = vld [vmem:[%s0] sm:$0xff]
    %v50 = vld [vmem:[%s0 + $0x8] sm:$0xff]
    %v51 = vlaneseq
    %v52 = vshrl.u32 %v51, 7
    %v53 = vsub.s32 0, %v52
    %v54 = vrot.slane %v30, %v53
    %vm55 = vcmask 31744
    %v57 = vsel %vm55, %v49, 0
    %v60 = vsel %vm55, %v50, 0
    %vm62 = vcmask 1043456
    %v64 = vsel %vm62, %v25, 0
    %66 = vmatprep.subr.mxu0 0.0
    %67 = vmatpush1.msra.mxu0 %v64
    %68 = vmatprep.subr.mxu0 0.0
    %69 = vmatpush1.msra.mxu0 0.0
    %70 = vmatprep.subr.mxu0 0.0
    %71 = vmatpush1.msra.mxu0 0.0
    %72 = vmatprep.subr.mxu0 0.0
    %73 = vmatpush1.msra.mxu0 0.0
    %74 = vmatprep.subr.mxu0 0.0
    %75 = vmatpush1.msra.mxu0 0.0
    %76 = vmatprep.subr.mxu0 0.0
    %77 = vmatpush1.msra.mxu0 0.0
    %78 = vmatprep.subr.mxu0 0.0
    %79 = vmatpush1.msra.mxu0 0.0
    %80 = vmatprep.subr.mxu0 0.0
    %81 = vmatpush1.msra.mxu0 0.0
    %82 = vmatprep.subr.mxu0 0.0
    %83 = vmatpush1.msra.mxu0 0.0
    %84 = vmatprep.subr.mxu0 0.0
    %85 = vmatpush1.msra.mxu0 0.0
    %86 = vmatprep.subr.mxu0 0.0
    %87 = vmatpush1.msra.mxu0 0.0
    %88 = vmatprep.subr.mxu0 0.0
    %89 = vmatpush1.msra.mxu0 0.0
    %90 = vmatprep.subr.mxu0 0.0
    %91 = vmatpush1.msra.mxu0 0.0
    %92 = vmatprep.subr.mxu0 0.0
    %93 = vmatpush1.msra.mxu0 0.0
    %94 = vmatprep.subr.mxu0 0.0
    %95 = vmatpush1.msra.mxu0 0.0
    %96 = vmatprep.subr.mxu0 0.0
    %97 = vmatpush1.msra.mxu0 0.0
    %98 = vmatprep.subr.mxu0 0.0
    %99 = vmatpush1.msra.mxu0 0.0
    %100 = vmatprep.subr.mxu0 0.0
    %101 = vmatpush1.msra.mxu0 0.0
    %102 = vmatprep.subr.mxu0 0.0
    %103 = vmatpush1.msra.mxu0 0.0
    %104 = vmatprep.subr.mxu0 0.0
    %105 = vmatpush1.msra.mxu0 0.0
    %106 = vmatprep.subr.mxu0 0.0
    %107 = vmatpush1.msra.mxu0 0.0
    %108 = vmatprep.subr.mxu0 0.0
    %109 = vmatpush1.msra.mxu0 0.0
    %110 = vmatprep.subr.mxu0 0.0
    %111 = vmatpush1.msra.mxu0 0.0
    %112 = vmatprep.subr.mxu0 0.0
    %113 = vmatpush1.msra.mxu0 0.0
    %114 = vmatprep.subr.mxu0 0.0
    %115 = vmatpush1.msra.mxu0 0.0
    %116 = vmatprep.subr.mxu0 0.0
    %117 = vmatpush1.msra.mxu0 0.0
    %118 = vmatprep.subr.mxu0 0.0
    %119 = vmatpush1.msra.mxu0 0.0
    %120 = vmatprep.subr.mxu0 0.0
    %121 = vmatpush1.msra.mxu0 0.0
    %122 = vmatprep.subr.mxu0 0.0
    %123 = vmatpush1.msra.mxu0 0.0
    %124 = vmatprep.subr.mxu0 0.0
    %125 = vmatpush1.msra.mxu0 0.0
    %126 = vmatprep.subr.mxu0 0.0
    %127 = vmatpush1.msra.mxu0 0.0
    %128 = vmatprep.subr.mxu0 0.0
    %129 = vmatpush1.msra.mxu0 0.0
    %130 = vmatprep.mubr.f32.mxu0 0.0
    %131 = vmatmul.mubr.f32.gmra.mrb[0].mxu0 %v57
    %v132 = vpop.f32.mrb[0].mxu0
    %v133 = vadd.f32 %v54, %v132
    %v134 = vpop.f32.mrb[0].mxu0
    %135 = vmatprep.mubr.f32.mxu0 0.0
    %136 = vmatmul.mubr.f32.gmra.mrb[0].mxu0 %v60
    %v137 = vpop.f32.mrb[0].mxu0
    %v138 = vadd.f32 %v54, %v137
    %v139 = vpop.f32.mrb[0].mxu0
    %140 = vdwg.mxu0
    %v141 = vmul.f32 %v133, %v47
    %v142 = vxor.u32 %v141, 2147483648
    %v143 = vmul.f32 %v142, 1.442695
    %v144 = vpow.pop %v143
    %v145 = vadd.f32 %v144, 1.0
    %v146 = vrcp.pop %v145
    %v147 = vmul.f32 1.0, %v146
    %v148 = vmul.f32 %v147, %v47
    %v149 = vsub.f32 %v148, %v48
    %151 = vrot.lane.b32.xlu0 %v149, 64
    %v152 = vpop.permute.xlu0 %151
    %v154 = vmul.f32 %v149, %v152
    %v155 = vtanh.pop %v154
    %157 = vrot.lane.b32.xlu0 %v155, 96
    %v158 = vpop.permute.xlu0 %157
    %v160 = vmul.f32 %v149, %v158
    %v161 = vlaneseq
    %v162 = vshrl.u32 %v161, 7
    %v163 = vsub.s32 0, %v162
    %v164 = vrot.slane %v39, %v163
    %166 = vrot.lane.b32.xlu0 %v160, 32
    %v167 = vpop.permute.xlu0 %166
    %vm168 = vcmask 261120
    %v169 = vsel %vm168, %v167, 0
    %171 = vmatprep.subr.mxu0 0.0
    %172 = vmatpush1.msra.mxu0 %v31
    %173 = vmatprep.subr.mxu0 0.0
    %174 = vmatpush1.msra.mxu0 %v32
    %175 = vmatprep.subr.mxu0 0.0
    %176 = vmatpush1.msra.mxu0 %v33
    %177 = vmatprep.subr.mxu0 0.0
    %178 = vmatpush1.msra.mxu0 %v34
    %179 = vmatprep.subr.mxu0 0.0
    %180 = vmatpush1.msra.mxu0 0.0
    %181 = vmatprep.subr.mxu0 0.0
    %182 = vmatpush1.msra.mxu0 0.0
    %183 = vmatprep.subr.mxu0 0.0
    %184 = vmatpush1.msra.mxu0 0.0
    %185 = vmatprep.subr.mxu0 0.0
    %186 = vmatpush1.msra.mxu0 0.0
    %187 = vmatprep.subr.mxu0 0.0
    %188 = vmatpush1.msra.mxu0 0.0
    %189 = vmatprep.subr.mxu0 0.0
    %190 = vmatpush1.msra.mxu0 0.0
    %191 = vmatprep.subr.mxu0 0.0
    %192 = vmatpush1.msra.mxu0 0.0
    %193 = vmatprep.subr.mxu0 0.0
    %194 = vmatpush1.msra.mxu0 0.0
    %195 = vmatprep.subr.mxu0 0.0
    %196 = vmatpush1.msra.mxu0 0.0
    %197 = vmatprep.subr.mxu0 0.0
    %198 = vmatpush1.msra.mxu0 0.0
    %199 = vmatprep.subr.mxu0 0.0
    %200 = vmatpush1.msra.mxu0 0.0
    %201 = vmatprep.subr.mxu0 0.0
    %202 = vmatpush1.msra.mxu0 0.0
    %203 = vmatprep.subr.mxu0 0.0
    %204 = vmatpush1.msra.mxu0 0.0
    %205 = vmatprep.subr.mxu0 0.0
    %206 = vmatpush1.msra.mxu0 0.0
    %207 = vmatprep.subr.mxu0 0.0
    %208 = vmatpush1.msra.mxu0 0.0
    %209 = vmatprep.subr.mxu0 0.0
    %210 = vmatpush1.msra.mxu0 0.0
    %211 = vmatprep.subr.mxu0 0.0
    %212 = vmatpush1.msra.mxu0 0.0
    %213 = vmatprep.subr.mxu0 0.0
    %214 = vmatpush1.msra.mxu0 0.0
    %215 = vmatprep.subr.mxu0 0.0
    %216 = vmatpush1.msra.mxu0 0.0
    %217 = vmatprep.subr.mxu0 0.0
    %218 = vmatpush1.msra.mxu0 0.0
    %219 = vmatprep.subr.mxu0 0.0
    %220 = vmatpush1.msra.mxu0 0.0
    %221 = vmatprep.subr.mxu0 0.0
    %222 = vmatpush1.msra.mxu0 0.0
    %223 = vmatprep.subr.mxu0 0.0
    %224 = vmatpush1.msra.mxu0 0.0
    %225 = vmatprep.subr.mxu0 0.0
    %226 = vmatpush1.msra.mxu0 0.0
    %227 = vmatprep.subr.mxu0 0.0
    %228 = vmatpush1.msra.mxu0 0.0
    %229 = vmatprep.subr.mxu0 0.0
    %230 = vmatpush1.msra.mxu0 0.0
    %231 = vmatprep.subr.mxu0 0.0
    %232 = vmatpush1.msra.mxu0 0.0
    %233 = vmatprep.subr.mxu0 0.0
    %234 = vmatpush1.msra.mxu0 0.0
    %235 = vmatprep.mubr.f32.mxu0 0.0
    %236 = vmatmul.mubr.f32.gmra.mrb[0].mxu0 %v169
    %v237 = vpop.f32.mrb[0].mxu0
    %v238 = vadd.f32 %v164, %v237
    %v239 = vpop.f32.mrb[0].mxu0
    %240 = vdwg.mxu0
    %v241 = vmul.f32 %v238, %v47
    %v242 = vxor.u32 %v241, 2147483648
    %v243 = vmul.f32 %v242, 1.442695
    %v244 = vpow.pop %v243
    %v245 = vadd.f32 %v244, 1.0
    %v246 = vrcp.pop %v245
    %v247 = vmul.f32 1.0, %v246
    %v248 = vmul.f32 %v247, %v47
    %v249 = vsub.f32 %v248, %v48
    %251 = vrot.lane.b32.xlu0 %v249, 64
    %v252 = vpop.permute.xlu0 %251
    %v254 = vmul.f32 %v249, %v252
    %v255 = vtanh.pop %v254
    %257 = vrot.lane.b32.xlu0 %v255, 96
    %v258 = vpop.permute.xlu0 %257
    %v260 = vmul.f32 %v249, %v258
    %261 = vmatprep.subr.mxu0 0.0
    %262 = vmatpush1.msra.mxu0 %v26
    %263 = vmatprep.subr.mxu0 0.0
    %264 = vmatpush1.msra.mxu0 %v27
    %265 = vmatprep.subr.mxu0 0.0
    %266 = vmatpush1.msra.mxu0 %v28
    %267 = vmatprep.subr.mxu0 0.0
    %268 = vmatpush1.msra.mxu0 %v29
    %269 = vmatprep.subr.mxu0 0.0
    %270 = vmatpush1.msra.mxu0 0.0
    %271 = vmatprep.subr.mxu0 0.0
    %272 = vmatpush1.msra.mxu0 0.0
    %273 = vmatprep.subr.mxu0 0.0
    %274 = vmatpush1.msra.mxu0 0.0
    %275 = vmatprep.subr.mxu0 0.0
    %276 = vmatpush1.msra.mxu0 0.0
    %277 = vmatprep.subr.mxu0 0.0
    %278 = vmatpush1.msra.mxu0 0.0
    %279 = vmatprep.subr.mxu0 0.0
    %280 = vmatpush1.msra.mxu0 0.0
    %281 = vmatprep.subr.mxu0 0.0
    %282 = vmatpush1.msra.mxu0 0.0
    %283 = vmatprep.subr.mxu0 0.0
    %284 = vmatpush1.msra.mxu0 0.0
    %285 = vmatprep.subr.mxu0 0.0
    %286 = vmatpush1.msra.mxu0 0.0
    %287 = vmatprep.subr.mxu0 0.0
    %288 = vmatpush1.msra.mxu0 0.0
    %289 = vmatprep.subr.mxu0 0.0
    %290 = vmatpush1.msra.mxu0 0.0
    %291 = vmatprep.subr.mxu0 0.0
    %292 = vmatpush1.msra.mxu0 0.0
    %293 = vmatprep.subr.mxu0 0.0
    %294 = vmatpush1.msra.mxu0 0.0
    %295 = vmatprep.subr.mxu0 0.0
    %296 = vmatpush1.msra.mxu0 0.0
    %297 = vmatprep.subr.mxu0 0.0
    %298 = vmatpush1.msra.mxu0 0.0
    %299 = vmatprep.subr.mxu0 0.0
    %300 = vmatpush1.msra.mxu0 0.0
    %301 = vmatprep.subr.mxu0 0.0
    %302 = vmatpush1.msra.mxu0 0.0
    %303 = vmatprep.subr.mxu0 0.0
    %304 = vmatpush1.msra.mxu0 0.0
    %305 = vmatprep.subr.mxu0 0.0
    %306 = vmatpush1.msra.mxu0 0.0
    %307 = vmatprep.subr.mxu0 0.0
    %308 = vmatpush1.msra.mxu0 0.0
    %309 = vmatprep.subr.mxu0 0.0
    %310 = vmatpush1.msra.mxu0 0.0
    %311 = vmatprep.subr.mxu0 0.0
    %312 = vmatpush1.msra.mxu0 0.0
    %313 = vmatprep.subr.mxu0 0.0
    %314 = vmatpush1.msra.mxu0 0.0
    %315 = vmatprep.subr.mxu0 0.0
    %316 = vmatpush1.msra.mxu0 0.0
    %317 = vmatprep.subr.mxu0 0.0
    %318 = vmatpush1.msra.mxu0 0.0
    %319 = vmatprep.subr.mxu0 0.0
    %320 = vmatpush1.msra.mxu0 0.0
    %321 = vmatprep.subr.mxu0 0.0
    %322 = vmatpush1.msra.mxu0 0.0
    %323 = vmatprep.subr.mxu0 0.0
    %324 = vmatpush1.msra.mxu0 0.0
    %325 = vmatprep.mubr.f32.mxu0 0.0
    %326 = vmatmul.mubr.f32.gmra.mrb[0].mxu0 %v169
    %v327 = vpop.f32.mrb[0].mxu0
    %v328 = vadd.f32 0.0, %v327
    %v329 = vpop.f32.mrb[0].mxu0
    %330 = vdwg.mxu0
    %v331 = vadd.f32 %v138, %v328
    %v332 = vmul.f32 %v331, %v47
    %v333 = vxor.u32 %v332, 2147483648
    %v334 = vmul.f32 %v333, 1.442695
    %v335 = vpow.pop %v334
    %v336 = vadd.f32 %v335, 1.0
    %v337 = vrcp.pop %v336
    %v338 = vmul.f32 1.0, %v337
    %v339 = vmul.f32 %v338, %v47
    %v340 = vsub.f32 %v339, %v48
    %342 = vrot.lane.b32.xlu0 %v154, 32
    %v343 = vpop.permute.xlu0 %342
    %v345 = vmul.f32 %v340, %v343
    %347 = vrot.lane.b32.xlu0 %v340, 64
    %v348 = vpop.permute.xlu0 %347
    %v350 = vmul.f32 %v340, %v348
    %352 = vrot.lane.b32.xlu0 %v350, 32
    %v353 = vpop.permute.xlu0 %352
    %v355 = vadd.f32 %v345, %v353
    %v356 = vtanh.pop %v355
    %358 = vrot.lane.b32.xlu0 %v356, 64
    %v359 = vpop.permute.xlu0 %358
    %v361 = vmul.f32 %v340, %v359
    %363 = vrot.lane.b32.xlu0 %v260, 32
    %v364 = vpop.permute.xlu0 %363
    %v365 = vsel %vm168, %v364, 0
    %367 = vmatprep.subr.mxu0 0.0
    %368 = vmatpush1.msra.mxu0 %v35
    %369 = vmatprep.subr.mxu0 0.0
    %370 = vmatpush1.msra.mxu0 %v36
    %371 = vmatprep.subr.mxu0 0.0
    %372 = vmatpush1.msra.mxu0 %v37
    %373 = vmatprep.subr.mxu0 0.0
    %374 = vmatpush1.msra.mxu0 %v38
    %375 = vmatprep.subr.mxu0 0.0
    %376 = vmatpush1.msra.mxu0 0.0
    %377 = vmatprep.subr.mxu0 0.0
    %378 = vmatpush1.msra.mxu0 0.0
    %379 = vmatprep.subr.mxu0 0.0
    %380 = vmatpush1.msra.mxu0 0.0
    %381 = vmatprep.subr.mxu0 0.0
    %382 = vmatpush1.msra.mxu0 0.0
    %383 = vmatprep.subr.mxu0 0.0
    %384 = vmatpush1.msra.mxu0 0.0
    %385 = vmatprep.subr.mxu0 0.0
    %386 = vmatpush1.msra.mxu0 0.0
    %387 = vmatprep.subr.mxu0 0.0
    %388 = vmatpush1.msra.mxu0 0.0
    %389 = vmatprep.subr.mxu0 0.0
    %390 = vmatpush1.msra.mxu0 0.0
    %391 = vmatprep.subr.mxu0 0.0
    %392 = vmatpush1.msra.mxu0 0.0
    %393 = vmatprep.subr.mxu0 0.0
    %394 = vmatpush1.msra.mxu0 0.0
    %395 = vmatprep.subr.mxu0 0.0
    %396 = vmatpush1.msra.mxu0 0.0
    %397 = vmatprep.subr.mxu0 0.0
    %398 = vmatpush1.msra.mxu0 0.0
    %399 = vmatprep.subr.mxu0 0.0
    %400 = vmatpush1.msra.mxu0 0.0
    %401 = vmatprep.subr.mxu0 0.0
    %402 = vmatpush1.msra.mxu0 0.0
    %403 = vmatprep.subr.mxu0 0.0
    %404 = vmatpush1.msra.mxu0 0.0
    %405 = vmatprep.subr.mxu0 0.0
    %406 = vmatpush1.msra.mxu0 0.0
    %407 = vmatprep.subr.mxu0 0.0
    %408 = vmatpush1.msra.mxu0 0.0
    %409 = vmatprep.subr.mxu0 0.0
    %410 = vmatpush1.msra.mxu0 0.0
    %411 = vmatprep.subr.mxu0 0.0
    %412 = vmatpush1.msra.mxu0 0.0
    %413 = vmatprep.subr.mxu0 0.0
    %414 = vmatpush1.msra.mxu0 0.0
    %415 = vmatprep.subr.mxu0 0.0
    %416 = vmatpush1.msra.mxu0 0.0
    %417 = vmatprep.subr.mxu0 0.0
    %418 = vmatpush1.msra.mxu0 0.0
    %419 = vmatprep.subr.mxu0 0.0
    %420 = vmatpush1.msra.mxu0 0.0
    %421 = vmatprep.subr.mxu0 0.0
    %422 = vmatpush1.msra.mxu0 0.0
    %423 = vmatprep.subr.mxu0 0.0
    %424 = vmatpush1.msra.mxu0 0.0
    %425 = vmatprep.subr.mxu0 0.0
    %426 = vmatpush1.msra.mxu0 0.0
    %427 = vmatprep.subr.mxu0 0.0
    %428 = vmatpush1.msra.mxu0 0.0
    %429 = vmatprep.subr.mxu0 0.0
    %430 = vmatpush1.msra.mxu0 0.0
    %431 = vmatprep.mubr.f32.mxu0 0.0
    %432 = vmatmul.mubr.f32.gmra.mrb[0].mxu0 %v365
    %v433 = vpop.f32.mrb[0].mxu0
    %v434 = vadd.f32 0.0, %v433
    %v435 = vpop.f32.mrb[0].mxu0
    %436 = vdwg.mxu0
    %438 = vrot.lane.b32.xlu0 %v361, 32
    %v439 = vpop.permute.xlu0 %438
    %v440 = vsel %vm168, %v439, 0
    %442 = vmatprep.subr.mxu0 0.0
    %443 = vmatpush1.msra.mxu0 %v31
    %444 = vmatprep.subr.mxu0 0.0
    %445 = vmatpush1.msra.mxu0 %v32
    %446 = vmatprep.subr.mxu0 0.0
    %447 = vmatpush1.msra.mxu0 %v33
    %448 = vmatprep.subr.mxu0 0.0
    %449 = vmatpush1.msra.mxu0 %v34
    %450 = vmatprep.subr.mxu0 0.0
    %451 = vmatpush1.msra.mxu0 0.0
    %452 = vmatprep.subr.mxu0 0.0
    %453 = vmatpush1.msra.mxu0 0.0
    %454 = vmatprep.subr.mxu0 0.0
    %455 = vmatpush1.msra.mxu0 0.0
    %456 = vmatprep.subr.mxu0 0.0
    %457 = vmatpush1.msra.mxu0 0.0
    %458 = vmatprep.subr.mxu0 0.0
    %459 = vmatpush1.msra.mxu0 0.0
    %460 = vmatprep.subr.mxu0 0.0
    %461 = vmatpush1.msra.mxu0 0.0
    %462 = vmatprep.subr.mxu0 0.0
    %463 = vmatpush1.msra.mxu0 0.0
    %464 = vmatprep.subr.mxu0 0.0
    %465 = vmatpush1.msra.mxu0 0.0
    %466 = vmatprep.subr.mxu0 0.0
    %467 = vmatpush1.msra.mxu0 0.0
    %468 = vmatprep.subr.mxu0 0.0
    %469 = vmatpush1.msra.mxu0 0.0
    %470 = vmatprep.subr.mxu0 0.0
    %471 = vmatpush1.msra.mxu0 0.0
    %472 = vmatprep.subr.mxu0 0.0
    %473 = vmatpush1.msra.mxu0 0.0
    %474 = vmatprep.subr.mxu0 0.0
    %475 = vmatpush1.msra.mxu0 0.0
    %476 = vmatprep.subr.mxu0 0.0
    %477 = vmatpush1.msra.mxu0 0.0
    %478 = vmatprep.subr.mxu0 0.0
    %479 = vmatpush1.msra.mxu0 0.0
    %480 = vmatprep.subr.mxu0 0.0
    %481 = vmatpush1.msra.mxu0 0.0
    %482 = vmatprep.subr.mxu0 0.0
    %483 = vmatpush1.msra.mxu0 0.0
    %484 = vmatprep.subr.mxu0 0.0
    %485 = vmatpush1.msra.mxu0 0.0
    %486 = vmatprep.subr.mxu0 0.0
    %487 = vmatpush1.msra.mxu0 0.0
    %488 = vmatprep.subr.mxu0 0.0
    %489 = vmatpush1.msra.mxu0 0.0
    %490 = vmatprep.subr.mxu0 0.0
    %491 = vmatpush1.msra.mxu0 0.0
    %492 = vmatprep.subr.mxu0 0.0
    %493 = vmatpush1.msra.mxu0 0.0
    %494 = vmatprep.subr.mxu0 0.0
    %495 = vmatpush1.msra.mxu0 0.0
    %496 = vmatprep.subr.mxu0 0.0
    %497 = vmatpush1.msra.mxu0 0.0
    %498 = vmatprep.subr.mxu0 0.0
    %499 = vmatpush1.msra.mxu0 0.0
    %500 = vmatprep.subr.mxu0 0.0
    %501 = vmatpush1.msra.mxu0 0.0
    %502 = vmatprep.subr.mxu0 0.0
    %503 = vmatpush1.msra.mxu0 0.0
    %504 = vmatprep.subr.mxu0 0.0
    %505 = vmatpush1.msra.mxu0 0.0
    %506 = vmatprep.mubr.f32.mxu0 0.0
    %507 = vmatmul.mubr.f32.gmra.mrb[0].mxu0 %v440
    %v508 = vpop.f32.mrb[0].mxu0
    %v509 = vadd.f32 %v434, %v508
    %v510 = vpop.f32.mrb[0].mxu0
    %511 = vdwg.mxu0
    %v512 = vadd.f32 %v509, %v164
    %v513 = vmul.f32 %v512, %v47
    %v514 = vxor.u32 %v513, 2147483648
    %v515 = vmul.f32 %v514, 1.442695
    %v516 = vpow.pop %v515
    %v517 = vadd.f32 %v516, 1.0
    %v518 = vrcp.pop %v517
    %v519 = vmul.f32 1.0, %v518
    %v520 = vmul.f32 %v519, %v47
    %v521 = vsub.f32 %v520, %v48
    %523 = vrot.lane.b32.xlu0 %v254, 32
    %v524 = vpop.permute.xlu0 %523
    %v526 = vmul.f32 %v521, %v524
    %528 = vrot.lane.b32.xlu0 %v521, 64
    %v529 = vpop.permute.xlu0 %528
    %v531 = vmul.f32 %v521, %v529
    %533 = vrot.lane.b32.xlu0 %v531, 32
    %v534 = vpop.permute.xlu0 %533
    %v536 = vadd.f32 %v526, %v534
    %v537 = vtanh.pop %v536
    %539 = vrot.lane.b32.xlu0 %v537, 64
    %v540 = vpop.permute.xlu0 %539
    %v542 = vmul.f32 %v521, %v540
    %544 = vrot.lane.b32.xlu0 %v542, 32
    %v545 = vpop.permute.xlu0 %544
    %v547 = vsel %vm168, %v40, 0
    %v549 = vsel %vm168, %v545, 0
    %551 = vmatprep.subr.mxu0 0.0
    %552 = vmatpush1.xpose.msra.mxu0 %v549
    %553 = vmatprep.subr.mxu0 0.0
    %554 = vmatpush1.xpose.msra.mxu0 0.0
    %555 = vmatprep.subr.mxu0 0.0
    %556 = vmatpush1.xpose.msra.mxu0 0.0
    %557 = vmatprep.subr.mxu0 0.0
    %558 = vmatpush1.xpose.msra.mxu0 0.0
    %559 = vmatprep.subr.mxu0 0.0
    %560 = vmatpush1.xpose.msra.mxu0 0.0
    %561 = vmatprep.subr.mxu0 0.0
    %562 = vmatpush1.xpose.msra.mxu0 0.0
    %563 = vmatprep.subr.mxu0 0.0
    %564 = vmatpush1.xpose.msra.mxu0 0.0
    %565 = vmatprep.subr.mxu0 0.0
    %566 = vmatpush1.xpose.msra.mxu0 0.0
    %567 = vmatprep.subr.mxu0 0.0
    %568 = vmatpush1.xpose.msra.mxu0 0.0
    %569 = vmatprep.subr.mxu0 0.0
    %570 = vmatpush1.xpose.msra.mxu0 0.0
    %571 = vmatprep.subr.mxu0 0.0
    %572 = vmatpush1.xpose.msra.mxu0 0.0
    %573 = vmatprep.subr.mxu0 0.0
    %574 = vmatpush1.xpose.msra.mxu0 0.0
    %575 = vmatprep.subr.mxu0 0.0
    %576 = vmatpush1.xpose.msra.mxu0 0.0
    %577 = vmatprep.subr.mxu0 0.0
    %578 = vmatpush1.xpose.msra.mxu0 0.0
    %579 = vmatprep.subr.mxu0 0.0
    %580 = vmatpush1.xpose.msra.mxu0 0.0
    %581 = vmatprep.subr.mxu0 0.0
    %582 = vmatpush1.xpose.msra.mxu0 0.0
    %583 = vmatprep.subr.mxu0 0.0
    %584 = vmatpush1.xpose.msra.mxu0 0.0
    %585 = vmatprep.subr.mxu0 0.0
    %586 = vmatpush1.xpose.msra.mxu0 0.0
    %587 = vmatprep.subr.mxu0 0.0
    %588 = vmatpush1.xpose.msra.mxu0 0.0
    %589 = vmatprep.subr.mxu0 0.0
    %590 = vmatpush1.xpose.msra.mxu0 0.0
    %591 = vmatprep.subr.mxu0 0.0
    %592 = vmatpush1.xpose.msra.mxu0 0.0
    %593 = vmatprep.subr.mxu0 0.0
    %594 = vmatpush1.xpose.msra.mxu0 0.0
    %595 = vmatprep.subr.mxu0 0.0
    %596 = vmatpush1.xpose.msra.mxu0 0.0
    %597 = vmatprep.subr.mxu0 0.0
    %598 = vmatpush1.xpose.msra.mxu0 0.0
    %599 = vmatprep.subr.mxu0 0.0
    %600 = vmatpush1.xpose.msra.mxu0 0.0
    %601 = vmatprep.subr.mxu0 0.0
    %602 = vmatpush1.xpose.msra.mxu0 0.0
    %603 = vmatprep.subr.mxu0 0.0
    %604 = vmatpush1.xpose.msra.mxu0 0.0
    %605 = vmatprep.subr.mxu0 0.0
    %606 = vmatpush1.xpose.msra.mxu0 0.0
    %607 = vmatprep.subr.mxu0 0.0
    %608 = vmatpush1.xpose.msra.mxu0 0.0
    %609 = vmatprep.subr.mxu0 0.0
    %610 = vmatpush1.xpose.msra.mxu0 0.0
    %611 = vmatprep.subr.mxu0 0.0
    %612 = vmatpush1.xpose.msra.mxu0 0.0
    %613 = vmatprep.subr.mxu0 0.0
    %614 = vmatpush1.xpose.msra.mxu0 0.0
    %615 = vmatprep.mubr.f32.mxu0 0.0
    %616 = vmatmul.mubr.f32.gmra.mrb[0].mxu0 %v547
    %v617 = vpop.f32.mrb[0].mxu0
    %v618 = vadd.f32 %v41, %v617
    %v619 = vpop.f32.mrb[0].mxu0
    %620 = vdwg.mxu0
    %vm621 = vcmask 57344
    %622 = vst.msk [vmem:[%s2] sm:$0x1] %vm621, %v618
    // Predicated region
    $region14: #{corona_virus_predictor_forward.1} parent=1 // pred_check
      _
    $region15: #{corona_virus_predictor_forward.1} parent=1 // pred_check_branch
      %624 = sbr.rel (0) target = $region17
    $region16: #{corona_virus_predictor_forward.1} parent=1 // pred_region
      _
    $region17: #{corona_virus_predictor_forward.1} parent=1 // pred_fallthru
      _
    // Predicated region
    $region18: #{corona_virus_predictor_forward.1} parent=1 // pred_check
      _
    $region19: #{corona_virus_predictor_forward.1} parent=1 // pred_check_branch
      %626 = sbr.rel (0) target = $region21
    $region20: #{corona_virus_predictor_forward.1} parent=1 // pred_region
      _
    $region21: #{corona_virus_predictor_forward.1} parent=1 // pred_fallthru
      _
    %627 = vsyncpa [#allocation3], 1

</llo_original>
